<compile_context>
chip_gen: v6e
topology: v6e:2x2x1
jax: 0.10.0
libtpu: 0.0.40
codegen_flags: <defaults>
</compile_context>

<pallas_src>
import jax
import jax.numpy as jnp
from jax import lax
from jax.experimental import pallas as pl
from jax.experimental.pallas import tpu as pltpu


def fc1_relu_kernel(x_ref, w_ref, b_ref, o_ref):
    # x_ref: [B, IN]   w_ref: [OUT, IN] (PyTorch layout)   b_ref: [1, OUT]
    # o_ref: [B, OUT]
    #
    # Contract the IN axis of both operands -> x @ W^T on the MXU, no
    # separate transpose pass over the weight.
    y = lax.dot_general(
        x_ref[...],
        w_ref[...],
        dimension_numbers=(((1,), (1,)), ((), ())),
        preferred_element_type=jnp.float32,
    )
    y = y + b_ref[...]                       # broadcast bias over batch rows (VPU)
    o_ref[...] = jnp.maximum(y, 0.0).astype(o_ref.dtype)


def lenet_fc1(x, weight, bias):
    """x: [B, IN] f32, weight: [OUT, IN] (PyTorch layout), bias: [OUT]."""
    B, IN = x.shape
    OUT = weight.shape[0]
    b2d = bias.reshape(1, OUT)               # [1, OUT] so it broadcasts over B

    bytes_accessed = 4 * (B * IN + OUT * IN + OUT + B * OUT)  # f32 in + out

    # Single-tile call: no grid, whole arrays resident in VMEM.
    # TODO(synk): if B ever grows beyond a few hundred rows, add a batch grid
    # with dimension_semantics=("parallel",) so v7x's second TensorCore is used.
    return pl.pallas_call(
        fc1_relu_kernel,
        out_shape=jax.ShapeDtypeStruct((B, OUT), x.dtype),
        in_specs=[
            pl.BlockSpec(memory_space=pltpu.MemorySpace.VMEM),
            pl.BlockSpec(memory_space=pltpu.MemorySpace.VMEM),
            pl.BlockSpec(memory_space=pltpu.MemorySpace.VMEM),
        ],
        out_specs=pl.BlockSpec(memory_space=pltpu.MemorySpace.VMEM),
        cost_estimate=pl.CostEstimate(
            flops=2 * B * IN * OUT,
            transcendentals=0,
            bytes_accessed=bytes_accessed,
        ),
    )(x, weight, b2d)


if __name__ == "__main__":
    # Classic LeNet-300-100 fc1 shape (784 -> 300), small batch.
    B, IN, OUT = 8, 784, 300

    key = jax.random.PRNGKey(0)
    kx, kw, kb = jax.random.split(key, 3)

    x = jax.random.normal(kx, (B, IN), dtype=jnp.float32)
    # Deterministic synthetic parameters (PyTorch layout: [OUT, IN], [OUT]).
    weight = jax.random.normal(kw, (OUT, IN), dtype=jnp.float32) * 0.05
    bias = jax.random.normal(kb, (OUT,), dtype=jnp.float32) * 0.05

    y = lenet_fc1(x, weight, bias)
    y = jax.block_until_ready(y)

    # Pure-JAX reference check (same math as fc1 + relu).
    y_ref = jnp.maximum(x @ weight.T + bias, 0.0)
    assert jnp.allclose(y, y_ref, atol=1e-4, rtol=1e-4), "mismatch vs reference"

    print("KERNEL_OK")
</pallas_src>

<mosaic_0001>
module attributes {stable_mosaic.version = 11 : i64} {
  func.func @fc1_relu_kernel(%arg0: memref<8x784xf32, #tpu.memory_space<vmem>>, %arg1: memref<300x784xf32, #tpu.memory_space<vmem>>, %arg2: memref<1x300xf32, #tpu.memory_space<vmem>>, %arg3: memref<8x300xf32, #tpu.memory_space<vmem>>) attributes {dimension_semantics = [], scalar_prefetch = 0 : i64, scratch_operands = 0 : i64, tpu.core_type = #tpu.core_type<tc>} {
    %c0 = arith.constant 0 : index
    %c0_0 = arith.constant 0 : index
    %0 = vector.load %arg0[%c0, %c0_0] : memref<8x784xf32, #tpu.memory_space<vmem>>, vector<8x784xf32>
    %c0_1 = arith.constant 0 : index
    %c0_2 = arith.constant 0 : index
    %1 = vector.load %arg1[%c0_1, %c0_2] : memref<300x784xf32, #tpu.memory_space<vmem>>, vector<300x784xf32>
    %cst = arith.constant dense<0.000000e+00> : vector<8x300xf32>
    %2 = tpu.matmul %0, %1, %cst {dimension_numbers = #tpu.dot_dimension_numbers<[1], [1], [0], [0], [0, 0, 1, 0], [], []>} : vector<8x784xf32>, vector<300x784xf32>, vector<8x300xf32> -> vector<8x300xf32>
    %c0_3 = arith.constant 0 : index
    %c0_4 = arith.constant 0 : index
    %3 = vector.load %arg2[%c0_3, %c0_4] : memref<1x300xf32, #tpu.memory_space<vmem>>, vector<1x300xf32>
    %4 = vector.broadcast %3 : vector<1x300xf32> to vector<8x300xf32>
    %5 = arith.addf %2, %4 : vector<8x300xf32>
    %cst_5 = arith.constant 0.000000e+00 : f32
    %6 = vector.broadcast %cst_5 : f32 to vector<8x300xf32>
    %7 = arith.maximumf %5, %6 : vector<8x300xf32>
    %c0_6 = arith.constant 0 : index
    %c0_7 = arith.constant 0 : index
    %8 = vector.load %arg3[%c0_6, %c0_7] : memref<8x300xf32, #tpu.memory_space<vmem>>, vector<8x300xf32>
    tpu.vector_store %arg3[%c0_6, %c0_7], %7 {strides = array<i32>} : memref<8x300xf32, #tpu.memory_space<vmem>>, vector<8x300xf32>,
    return
  }
}

</mosaic_0001>

<llo_original>
// kernel: tpu_custom_call.1
$region0: #{tpu_custom_call.1}
  #allocation0 [shape = 'u32[]', space=smem, size = 0x4, offset = 0x4, fixed_abs, tag = 'smem constant byte address 0x4 - core index']
  #allocation1 [shape = 'u32[144,128]{1,0:T(1,128)}', space=vmem, size = 0x12000, scoped, tag = 'internal scratch']
  %s0 = inlined_call_operand.hbm [shape: f32[8,784], index: 0, kind: input, shape index: {}]
  %s1 = inlined_call_operand.hbm [shape: f32[300,784], index: 1, kind: input, shape index: {}]
  %s2 = inlined_call_operand.hbm [shape: f32[1,300], index: 2, kind: input, shape index: {}]
  %s3 = inlined_call_operand.hbm [shape: f32[8,300], index: 3, kind: output, shape index: {}]
  %s4 = sld [smem:[#allocation0]]
  $region34: #{tpu_custom_call.1} parent=0
    _
  %s6 = ssub.s32 1, %s4
  %s7 = scalar_select 0, %s6, %s4
  $region1: #{tpu_custom_call.1} parent=0
    #allocation2 [shape = 'u8[28672]{0}', space=vmem, size = 0x7000, scoped, tag = 'input window, operand 0, single buffered']
    #allocation3 [shape = 's32[1]{0}', space=sflag, size = 0x4, scoped, tag = 'scoped memory for tpu_custom_call.1']
    #allocation4 [shape = 's32[1]{0}', space=sflag, size = 0x4, scoped, tag = 'scoped memory for tpu_custom_call.1']
    #allocation5 [shape = 'u8[1089536]{0}', space=vmem, size = 0x10a000, scoped, tag = 'input window, operand 1, single buffered']
    #allocation6 [shape = 's32[1]{0}', space=sflag, size = 0x4, scoped, tag = 'scoped memory for tpu_custom_call.1']
    #allocation7 [shape = 'u8[1536]{0}', space=vmem, size = 0x800, scoped, tag = 'input window, operand 2, single buffered']
    #allocation8 [shape = 'u8[12288]{0}', space=vmem, size = 0x3000, scoped, tag = 'output window, operand 0, single buffered']
    %8 = vsyncpa [#allocation3], 0
    %9 = vsyncpa [#allocation6], 0
    %10 = vsyncpa [#allocation4], 0
    // Predicated region
    $region2: #{tpu_custom_call.1} parent=1 // pred_check
      _
    $region3: #{tpu_custom_call.1} parent=1 // pred_check_branch
      %12 = sbr.rel (0) target = $region5
    $region4: #{tpu_custom_call.1} parent=1 // pred_region
      %s14 = ssub.s32 896, 896
      %15 = vsyncadd [#allocation3], %s14
      %s17 = sshll.u32 [#allocation2], 4
      %s18 = int_to_ptr.vmem [resolvable:$true] %s17
      %20 = dma.hbm_to_vmem [thread:$0]  %s0, 896, %s18, [#allocation3]
    $region5: #{tpu_custom_call.1} parent=1 // pred_fallthru
      _
    // Predicated region
    $region6: #{tpu_custom_call.1} parent=1 // pred_check
      _
    $region7: #{tpu_custom_call.1} parent=1 // pred_check_branch
      %22 = sbr.rel (0) target = $region9
    $region8: #{tpu_custom_call.1} parent=1 // pred_region
      %s24 = ssub.s32 34048, 34048
      %25 = vsyncadd [#allocation6], %s24
      %s26 = sshll.u32 [#allocation5], 4
      %s27 = int_to_ptr.vmem [resolvable:$true] %s26
      %32 = dma.hbm_to_vmem [thread:$0]  %s1, 34048, %s27, [#allocation6], 896, 896, 56
    $region9: #{tpu_custom_call.1} parent=1 // pred_fallthru
      _
    // Predicated region
    $region10: #{tpu_custom_call.1} parent=1 // pred_check
      _
    $region11: #{tpu_custom_call.1} parent=1 // pred_check_branch
      %34 = sbr.rel (0) target = $region13
    $region12: #{tpu_custom_call.1} parent=1 // pred_region
      %s36 = ssub.s32 48, 48
      %37 = vsyncadd [#allocation6], %s36
      %s39 = sshll.u32 [#allocation7], 4
      %s40 = int_to_ptr.vmem [resolvable:$true] %s39
      %42 = dma.hbm_to_vmem [thread:$0]  %s2, 48, %s40, [#allocation6]
    $region13: #{tpu_custom_call.1} parent=1 // pred_fallthru
      _
    // Predicated region
    $region14: #{tpu_custom_call.1} parent=1 // pred_check
      _
    $region15: #{tpu_custom_call.1} parent=1 // pred_check_branch
      %44 = sbr.rel (0) target = $region17
    $region16: #{tpu_custom_call.1} parent=1 // pred_region
      %45 = dma.done [#allocation3], 896
    $region17: #{tpu_custom_call.1} parent=1 // pred_fallthru
      _
    // Predicated region
    $region18: #{tpu_custom_call.1} parent=1 // pred_check
      _
    $region19: #{tpu_custom_call.1} parent=1 // pred_check_branch
      %47 = sbr.rel (0) target = $region21
    $region20: #{tpu_custom_call.1} parent=1 // pred_region
      %48 = dma.done [#allocation6], 34048
    $region21: #{tpu_custom_call.1} parent=1 // pred_fallthru
      _
    // Predicated region
    $region22: #{tpu_custom_call.1} parent=1 // pred_check
      _
    $region23: #{tpu_custom_call.1} parent=1 // pred_check_branch
      %50 = sbr.rel (0) target = $region25
    $region24: #{tpu_custom_call.1} parent=1 // pred_region
      %51 = dma.done [#allocation6], 48
    $region25: #{tpu_custom_call.1} parent=1 // pred_fallthru
      _
    %v52 = vld [vmem:[#allocation2] sm:$0xff]
    %v53 = vld [vmem:[#allocation2 + $0x8] sm:$0xff]
    %v54 = vld [vmem:[#allocation2 + $0x10] sm:$0xff]
    %v55 = vld [vmem:[#allocation2 + $0x18] sm:$0xff]
    %v56 = vld [vmem:[#allocation2 + $0x20] sm:$0xff]
    %v57 = vld [vmem:[#allocation2 + $0x28] sm:$0xff]
    %v58 = vld [vmem:[#allocation2 + $0x30] sm:$0xff]
    %v59 = vld [vmem:[#allocation5] sm:$0xff]
    %v60 = vld [vmem:[#allocation5 + $0x8] sm:$0xff]
    %v61 = vld [vmem:[#allocation5 + $0x10] sm:$0xff]
    %v62 = vld [vmem:[#allocation5 + $0x18] sm:$0xff]
    %v63 = vld [vmem:[#allocation5 + $0x20] sm:$0xff]
    %v64 = vld [vmem:[#allocation5 + $0x28] sm:$0xff]
    %v65 = vld [vmem:[#allocation5 + $0x30] sm:$0xff]
    %v66 = vld [vmem:[#allocation5 + $0x38] sm:$0xff]
    %v67 = vld [vmem:[#allocation5 + $0x40] sm:$0xff]
    %v68 = vld [vmem:[#allocation5 + $0x48] sm:$0xff]
    %v69 = vld [vmem:[#allocation5 + $0x50] sm:$0xff]
    %v70 = vld [vmem:[#allocation5 + $0x58] sm:$0xff]
    %v71 = vld [vmem:[#allocation5 + $0x60] sm:$0xff]
    %v72 = vld [vmem:[#allocation5 + $0x68] sm:$0xff]
    %v73 = vld [vmem:[#allocation5 + $0x70] sm:$0xff]
    %v74 = vld [vmem:[#allocation5 + $0x78] sm:$0xff]
    %v75 = vld [vmem:[#allocation5 + $0x80] sm:$0xff]
    %v76 = vld [vmem:[#allocation5 + $0x88] sm:$0xff]
    %v77 = vld [vmem:[#allocation5 + $0x90] sm:$0xff]
    %v78 = vld [vmem:[#allocation5 + $0x98] sm:$0xff]
    %v79 = vld [vmem:[#allocation5 + $0xa0] sm:$0xff]
    %v80 = vld [vmem:[#allocation5 + $0xa8] sm:$0xff]
    %v81 = vld [vmem:[#allocation5 + $0xb0] sm:$0xff]
    %v82 = vld [vmem:[#allocation5 + $0xb8] sm:$0xff]
    %v83 = vld [vmem:[#allocation5 + $0xc0] sm:$0xff]
    %v84 = vld [vmem:[#allocation5 + $0xc8] sm:$0xff]
    %v85 = vld [vmem:[#allocation5 + $0xd0] sm:$0xff]
    %v86 = vld [vmem:[#allocation5 + $0xd8] sm:$0xff]
    %v87 = vld [vmem:[#allocation5 + $0xe0] sm:$0xff]
    %v88 = vld [vmem:[#allocation5 + $0xe8] sm:$0xff]
    %v89 = vld [vmem:[#allocation5 + $0xf0] sm:$0xff]
    %v90 = vld [vmem:[#allocation5 + $0xf8] sm:$0xff]
    %v91 = vld [vmem:[#allocation5 + $0x100] sm:$0xff]
    %v92 = vld [vmem:[#allocation5 + $0x108] sm:$0xff]
    %v93 = vld [vmem:[#allocation5 + $0x110] sm:$0xff]
    %v94 = vld [vmem:[#allocation5 + $0x118] sm:$0xff]
    %v95 = vld [vmem:[#allocation5 + $0x120] sm:$0xff]
    %v96 = vld [vmem:[#allocation5 + $0x128] sm:$0xff]
    %v97 = vld [vmem:[#allocation5 + $0x130] sm:$0xff]
    %v98 = vld [vmem:[#allocation5 + $0x138] sm:$0xff]
    %v99 = vld [vmem:[#allocation5 + $0x140] sm:$0xff]
    %v100 = vld [vmem:[#allocation5 + $0x148] sm:$0xff]
    %v101 = vld [vmem:[#allocation5 + $0x150] sm:$0xff]
    %v102 = vld [vmem:[#allocation5 + $0x158] sm:$0xff]
    %v103 = vld [vmem:[#allocation5 + $0x160] sm:$0xff]
    %v104 = vld [vmem:[#allocation5 + $0x168] sm:$0xff]
    %v105 = vld [vmem:[#allocation5 + $0x170] sm:$0xff]
    %v106 = vld [vmem:[#allocation5 + $0x178] sm:$0xff]
    %v107 = vld [vmem:[#allocation5 + $0x180] sm:$0xff]
    %v108 = vld [vmem:[#allocation5 + $0x188] sm:$0xff]
    %v109 = vld [vmem:[#allocation5 + $0x190] sm:$0xff]
    %v110 = vld [vmem:[#allocation5 + $0x198] sm:$0xff]
    %v111 = vld [vmem:[#allocation5 + $0x1a0] sm:$0xff]
    %v112 = vld [vmem:[#allocation5 + $0x1a8] sm:$0xff]
    %v113 = vld [vmem:[#allocation5 + $0x1b0] sm:$0xff]
    %v114 = vld [vmem:[#allocation5 + $0x1b8] sm:$0xff]
    %v115 = vld [vmem:[#allocation5 + $0x1c0] sm:$0xff]
    %v116 = vld [vmem:[#allocation5 + $0x1c8] sm:$0xff]
    %v117 = vld [vmem:[#allocation5 + $0x1d0] sm:$0xff]
    %v118 = vld [vmem:[#allocation5 + $0x1d8] sm:$0xff]
    %v119 = vld [vmem:[#allocation5 + $0x1e0] sm:$0xff]
    %v120 = vld [vmem:[#allocation5 + $0x1e8] sm:$0xff]
    %v121 = vld [vmem:[#allocation5 + $0x1f0] sm:$0xff]
    %v122 = vld [vmem:[#allocation5 + $0x1f8] sm:$0xff]
    %v123 = vld [vmem:[#allocation5 + $0x200] sm:$0xff]
    %v124 = vld [vmem:[#allocation5 + $0x208] sm:$0xff]
    %v125 = vld [vmem:[#allocation5 + $0x210] sm:$0xff]
    %v126 = vld [vmem:[#allocation5 + $0x218] sm:$0xff]
    %v127 = vld [vmem:[#allocation5 + $0x220] sm:$0xff]
    %v128 = vld [vmem:[#allocation5 + $0x228] sm:$0xff]
    %v129 = vld [vmem:[#allocation5 + $0x230] sm:$0xff]
    %v130 = vld [vmem:[#allocation5 + $0x238] sm:$0xff]
    %v131 = vld [vmem:[#allocation5 + $0x240] sm:$0xff]
    %v132 = vld [vmem:[#allocation5 + $0x248] sm:$0xff]
    %v133 = vld [vmem:[#allocation5 + $0x250] sm:$0xff]
    %v134 = vld [vmem:[#allocation5 + $0x258] sm:$0xff]
    %v135 = vld [vmem:[#allocation5 + $0x260] sm:$0xff]
    %v136 = vld [vmem:[#allocation5 + $0x268] sm:$0xff]
    %v137 = vld [vmem:[#allocation5 + $0x270] sm:$0xff]
    %v138 = vld [vmem:[#allocation5 + $0x278] sm:$0xff]
    %v139 = vld [vmem:[#allocation5 + $0x280] sm:$0xff]
    %v140 = vld [vmem:[#allocation5 + $0x288] sm:$0xff]
    %v141 = vld [vmem:[#allocation5 + $0x290] sm:$0xff]
    %v142 = vld [vmem:[#allocation5 + $0x298] sm:$0xff]
    %v143 = vld [vmem:[#allocation5 + $0x2a0] sm:$0xff]
    %v144 = vld [vmem:[#allocation5 + $0x2a8] sm:$0xff]
    %v145 = vld [vmem:[#allocation5 + $0x2b0] sm:$0xff]
    %v146 = vld [vmem:[#allocation5 + $0x2b8] sm:$0xff]
    %v147 = vld [vmem:[#allocation5 + $0x2c0] sm:$0xff]
    %v148 = vld [vmem:[#allocation5 + $0x2c8] sm:$0xff]
    %v149 = vld [vmem:[#allocation5 + $0x2d0] sm:$0xff]
    %v150 = vld [vmem:[#allocation5 + $0x2d8] sm:$0xff]
    %v151 = vld [vmem:[#allocation5 + $0x2e0] sm:$0xff]
    %v152 = vld [vmem:[#allocation5 + $0x2e8] sm:$0xff]
    %v153 = vld [vmem:[#allocation5 + $0x2f0] sm:$0xff]
    %v154 = vld [vmem:[#allocation5 + $0x2f8] sm:$0xff]
    %v155 = vld [vmem:[#allocation5 + $0x300] sm:$0xff]
    %v156 = vld [vmem:[#allocation5 + $0x308] sm:$0xff]
    %v157 = vld [vmem:[#allocation5 + $0x310] sm:$0xff]
    %v158 = vld [vmem:[#allocation5 + $0x318] sm:$0xff]
    %v159 = vld [vmem:[#allocation5 + $0x320] sm:$0xff]
    %v160 = vld [vmem:[#allocation5 + $0x328] sm:$0xff]
    %v161 = vld [vmem:[#allocation5 + $0x330] sm:$0xff]
    %v162 = vld [vmem:[#allocation5 + $0x338] sm:$0xff]
    %v163 = vld [vmem:[#allocation5 + $0x340] sm:$0xff]
    %v164 = vld [vmem:[#allocation5 + $0x348] sm:$0xff]
    %v165 = vld [vmem:[#allocation5 + $0x350] sm:$0xff]
    %v166 = vld [vmem:[#allocation5 + $0x358] sm:$0xff]
    %v167 = vld [vmem:[#allocation5 + $0x360] sm:$0xff]
    %v168 = vld [vmem:[#allocation5 + $0x368] sm:$0xff]
    %v169 = vld [vmem:[#allocation5 + $0x370] sm:$0xff]
    %v170 = vld [vmem:[#allocation5 + $0x378] sm:$0xff]
    %v171 = vld [vmem:[#allocation5 + $0x380] sm:$0xff]
    %v172 = vld [vmem:[#allocation5 + $0x388] sm:$0xff]
    %v173 = vld [vmem:[#allocation5 + $0x390] sm:$0xff]
    %v174 = vld [vmem:[#allocation5 + $0x398] sm:$0xff]
    %v175 = vld [vmem:[#allocation5 + $0x3a0] sm:$0xff]
    %v176 = vld [vmem:[#allocation5 + $0x3a8] sm:$0xff]
    %v177 = vld [vmem:[#allocation5 + $0x3b0] sm:$0xff]
    %v178 = vld [vmem:[#allocation5 + $0x3b8] sm:$0xff]
    %v179 = vld [vmem:[#allocation5 + $0x3c0] sm:$0xff]
    %v180 = vld [vmem:[#allocation5 + $0x3c8] sm:$0xff]
    %v181 = vld [vmem:[#allocation5 + $0x3d0] sm:$0xff]
    %v182 = vld [vmem:[#allocation5 + $0x3d8] sm:$0xff]
    %v183 = vld [vmem:[#allocation5 + $0x3e0] sm:$0xff]
    %v184 = vld [vmem:[#allocation5 + $0x3e8] sm:$0xff]
    %v185 = vld [vmem:[#allocation5 + $0x3f0] sm:$0xff]
    %v186 = vld [vmem:[#allocation5 + $0x3f8] sm:$0xff]
    %v187 = vld [vmem:[#allocation5 + $0x400] sm:$0xff]
    %v188 = vld [vmem:[#allocation5 + $0x408] sm:$0xff]
    %v189 = vld [vmem:[#allocation5 + $0x410] sm:$0xff]
    %v190 = vld [vmem:[#allocation5 + $0x418] sm:$0xff]
    %v191 = vld [vmem:[#allocation5 + $0x420] sm:$0xff]
    %v192 = vld [vmem:[#allocation5 + $0x428] sm:$0xff]
    %v193 = vld [vmem:[#allocation5 + $0x430] sm:$0xff]
    %v194 = vld [vmem:[#allocation5 + $0x438] sm:$0xff]
    %v195 = vld [vmem:[#allocation5 + $0x440] sm:$0xff]
    %v196 = vld [vmem:[#allocation5 + $0x448] sm:$0xff]
    %v197 = vld [vmem:[#allocation5 + $0x450] sm:$0xff]
    %v198 = vld [vmem:[#allocation5 + $0x458] sm:$0xff]
    %v199 = vld [vmem:[#allocation5 + $0x460] sm:$0xff]
    %v200 = vld [vmem:[#allocation5 + $0x468] sm:$0xff]
    %v201 = vld [vmem:[#allocation5 + $0x470] sm:$0xff]
    %v202 = vld [vmem:[#allocation5 + $0x478] sm:$0xff]
    %v203 = vld [vmem:[#allocation5 + $0x480] sm:$0xff]
    %v204 = vld [vmem:[#allocation5 + $0x488] sm:$0xff]
    %v205 = vld [vmem:[#allocation5 + $0x490] sm:$0xff]
    %v206 = vld [vmem:[#allocation5 + $0x498] sm:$0xff]
    %v207 = vld [vmem:[#allocation5 + $0x4a0] sm:$0xff]
    %v208 = vld [vmem:[#allocation5 + $0x4a8] sm:$0xff]
    %v209 = vld [vmem:[#allocation5 + $0x4b0] sm:$0xff]
    %v210 = vld [vmem:[#allocation5 + $0x4b8] sm:$0xff]
    %v211 = vld [vmem:[#allocation5 + $0x4c0] sm:$0xff]
    %v212 = vld [vmem:[#allocation5 + $0x4c8] sm:$0xff]
    %v213 = vld [vmem:[#allocation5 + $0x4d0] sm:$0xff]
    %v214 = vld [vmem:[#allocation5 + $0x4d8] sm:$0xff]
    %v215 = vld [vmem:[#allocation5 + $0x4e0] sm:$0xff]
    %v216 = vld [vmem:[#allocation5 + $0x4e8] sm:$0xff]
    %v217 = vld [vmem:[#allocation5 + $0x4f0] sm:$0xff]
    %v218 = vld [vmem:[#allocation5 + $0x4f8] sm:$0xff]
    %v219 = vld [vmem:[#allocation5 + $0x500] sm:$0xff]
    %v220 = vld [vmem:[#allocation5 + $0x508] sm:$0xff]
    %v221 = vld [vmem:[#allocation5 + $0x510] sm:$0xff]
    %v222 = vld [vmem:[#allocation5 + $0x518] sm:$0xff]
    %v223 = vld [vmem:[#allocation5 + $0x520] sm:$0xff]
    %v224 = vld [vmem:[#allocation5 + $0x528] sm:$0xff]
    %v225 = vld [vmem:[#allocation5 + $0x530] sm:$0xff]
    %v226 = vld [vmem:[#allocation5 + $0x538] sm:$0xff]
    %v227 = vld [vmem:[#allocation5 + $0x540] sm:$0xff]
    %v228 = vld [vmem:[#allocation5 + $0x548] sm:$0xff]
    %v229 = vld [vmem:[#allocation5 + $0x550] sm:$0xff]
    %v230 = vld [vmem:[#allocation5 + $0x558] sm:$0xff]
    %v231 = vld [vmem:[#allocation5 + $0x560] sm:$0xff]
    %v232 = vld [vmem:[#allocation5 + $0x568] sm:$0xff]
    %v233 = vld [vmem:[#allocation5 + $0x570] sm:$0xff]
    %v234 = vld [vmem:[#allocation5 + $0x578] sm:$0xff]
    %v235 = vld [vmem:[#allocation5 + $0x580] sm:$0xff]
    %v236 = vld [vmem:[#allocation5 + $0x588] sm:$0xff]
    %v237 = vld [vmem:[#allocation5 + $0x590] sm:$0xff]
    %v238 = vld [vmem:[#allocation5 + $0x598] sm:$0xff]
    %v239 = vld [vmem:[#allocation5 + $0x5a0] sm:$0xff]
    %v240 = vld [vmem:[#allocation5 + $0x5a8] sm:$0xff]
    %v241 = vld [vmem:[#allocation5 + $0x5b0] sm:$0xff]
    %v242 = vld [vmem:[#allocation5 + $0x5b8] sm:$0xff]
    %v243 = vld [vmem:[#allocation5 + $0x5c0] sm:$0xff]
    %v244 = vld [vmem:[#allocation5 + $0x5c8] sm:$0xff]
    %v245 = vld [vmem:[#allocation5 + $0x5d0] sm:$0xff]
    %v246 = vld [vmem:[#allocation5 + $0x5d8] sm:$0xff]
    %v247 = vld [vmem:[#allocation5 + $0x5e0] sm:$0xff]
    %v248 = vld [vmem:[#allocation5 + $0x5e8] sm:$0xff]
    %v249 = vld [vmem:[#allocation5 + $0x5f0] sm:$0xff]
    %v250 = vld [vmem:[#allocation5 + $0x5f8] sm:$0xff]
    %v251 = vld [vmem:[#allocation5 + $0x600] sm:$0xff]
    %v252 = vld [vmem:[#allocation5 + $0x608] sm:$0xff]
    %v253 = vld [vmem:[#allocation5 + $0x610] sm:$0xff]
    %v254 = vld [vmem:[#allocation5 + $0x618] sm:$0xff]
    %v255 = vld [vmem:[#allocation5 + $0x620] sm:$0xff]
    %v256 = vld [vmem:[#allocation5 + $0x628] sm:$0xff]
    %v257 = vld [vmem:[#allocation5 + $0x630] sm:$0xff]
    %v258 = vld [vmem:[#allocation5 + $0x638] sm:$0xff]
    %v259 = vld [vmem:[#allocation5 + $0x640] sm:$0xff]
    %v260 = vld [vmem:[#allocation5 + $0x648] sm:$0xff]
    %v261 = vld [vmem:[#allocation5 + $0x650] sm:$0xff]
    %v262 = vld [vmem:[#allocation5 + $0x658] sm:$0xff]
    %v263 = vld [vmem:[#allocation5 + $0x660] sm:$0xff]
    %v264 = vld [vmem:[#allocation5 + $0x668] sm:$0xff]
    %v265 = vld [vmem:[#allocation5 + $0x670] sm:$0xff]
    %v266 = vld [vmem:[#allocation5 + $0x678] sm:$0xff]
    %v267 = vld [vmem:[#allocation5 + $0x680] sm:$0xff]
    %v268 = vld [vmem:[#allocation5 + $0x688] sm:$0xff]
    %v269 = vld [vmem:[#allocation5 + $0x690] sm:$0xff]
    %v270 = vld [vmem:[#allocation5 + $0x698] sm:$0xff]
    %v271 = vld [vmem:[#allocation5 + $0x6a0] sm:$0xff]
    %v272 = vld [vmem:[#allocation5 + $0x6a8] sm:$0xff]
    %v273 = vld [vmem:[#allocation5 + $0x6b0] sm:$0xff]
    %v274 = vld [vmem:[#allocation5 + $0x6b8] sm:$0xff]
    %v275 = vld [vmem:[#allocation5 + $0x6c0] sm:$0xff]
    %v276 = vld [vmem:[#allocation5 + $0x6c8] sm:$0xff]
    %v277 = vld [vmem:[#allocation5 + $0x6d0] sm:$0xff]
    %v278 = vld [vmem:[#allocation5 + $0x6d8] sm:$0xff]
    %v279 = vld [vmem:[#allocation5 + $0x6e0] sm:$0xff]
    %v280 = vld [vmem:[#allocation5 + $0x6e8] sm:$0xff]
    %v281 = vld [vmem:[#allocation5 + $0x6f0] sm:$0xff]
    %v282 = vld [vmem:[#allocation5 + $0x6f8] sm:$0xff]
    %v283 = vld [vmem:[#allocation5 + $0x700] sm:$0xff]
    %v284 = vld [vmem:[#allocation5 + $0x708] sm:$0xff]
    %v285 = vld [vmem:[#allocation5 + $0x710] sm:$0xff]
    %v286 = vld [vmem:[#allocation5 + $0x718] sm:$0xff]
    %v287 = vld [vmem:[#allocation5 + $0x720] sm:$0xff]
    %v288 = vld [vmem:[#allocation5 + $0x728] sm:$0xff]
    %v289 = vld [vmem:[#allocation5 + $0x730] sm:$0xff]
    %v290 = vld [vmem:[#allocation5 + $0x738] sm:$0xff]
    %v291 = vld [vmem:[#allocation5 + $0x740] sm:$0xff]
    %v292 = vld [vmem:[#allocation5 + $0x748] sm:$0xff]
    %v293 = vld [vmem:[#allocation5 + $0x750] sm:$0xff]
    %v294 = vld [vmem:[#allocation5 + $0x758] sm:$0xff]
    %v295 = vld [vmem:[#allocation5 + $0x760] sm:$0xff]
    %v296 = vld [vmem:[#allocation5 + $0x768] sm:$0xff]
    %v297 = vld [vmem:[#allocation5 + $0x770] sm:$0xff]
    %v298 = vld [vmem:[#allocation5 + $0x778] sm:$0xff]
    %v299 = vld [vmem:[#allocation5 + $0x780] sm:$0xff]
    %v300 = vld [vmem:[#allocation5 + $0x788] sm:$0xff]
    %v301 = vld [vmem:[#allocation5 + $0x790] sm:$0xff]
    %v302 = vld [vmem:[#allocation5 + $0x798] sm:$0xff]
    %v303 = vld [vmem:[#allocation5 + $0x7a0] sm:$0xff]
    %v304 = vld [vmem:[#allocation5 + $0x7a8] sm:$0xff]
    %v305 = vld [vmem:[#allocation5 + $0x7b0] sm:$0xff]
    %v306 = vld [vmem:[#allocation5 + $0x7b8] sm:$0xff]
    %v307 = vld [vmem:[#allocation5 + $0x7c0] sm:$0xff]
    %v308 = vld [vmem:[#allocation5 + $0x7c8] sm:$0xff]
    %v309 = vld [vmem:[#allocation5 + $0x7d0] sm:$0xff]
    %v310 = vld [vmem:[#allocation5 + $0x7d8] sm:$0xff]
    %v311 = vld [vmem:[#allocation5 + $0x7e0] sm:$0xff]
    %v312 = vld [vmem:[#allocation5 + $0x7e8] sm:$0xff]
    %v313 = vld [vmem:[#allocation5 + $0x7f0] sm:$0xff]
    %v314 = vld [vmem:[#allocation5 + $0x7f8] sm:$0xff]
    %v315 = vld [vmem:[#allocation5 + $0x800] sm:$0xff]
    %v316 = vld [vmem:[#allocation5 + $0x808] sm:$0xff]
    %v317 = vld [vmem:[#allocation5 + $0x810] sm:$0xff]
    %v318 = vld [vmem:[#allocation5 + $0x818] sm:$0xf]
    %v319 = vld [vmem:[#allocation5 + $0x820] sm:$0xf]
    %v320 = vld [vmem:[#allocation5 + $0x828] sm:$0xf]
    %v321 = vld [vmem:[#allocation5 + $0x830] sm:$0xf]
    %v322 = vld [vmem:[#allocation5 + $0x838] sm:$0xf]
    %v323 = vld [vmem:[#allocation5 + $0x840] sm:$0xf]
    %v324 = vld [vmem:[#allocation5 + $0x848] sm:$0xf]
    %v325 = vld [vmem:[#allocation7] sm:$0x7]
    %v327 = vlaneseq
    %v328 = vshrl.u32 %v327, 7
    %v329 = vsub.s32 0, %v328
    %v330 = vrot.slane %v325, %v329
    %v331 = vlaneseq
    %v332 = vshrl.u32 %v331, 7
    %v333 = vsub.s32 1, %v332
    %v334 = vrot.slane %v325, %v333
    %v335 = vlaneseq
    %v336 = vshrl.u32 %v335, 7
    %v337 = vsub.s32 2, %v336
    %v338 = vrot.slane %v325, %v337
    %vm342 = vcmask 130048
    %v344 = vsel %vm342, %v58, 0
    %v347 = vsel %vm342, %v65, 0
    %v350 = vsel %vm342, %v72, 0
    %v353 = vsel %vm342, %v79, 0
    %v356 = vsel %vm342, %v86, 0
    %v359 = vsel %vm342, %v93, 0
    %v362 = vsel %vm342, %v100, 0
    %v365 = vsel %vm342, %v107, 0
    %v368 = vsel %vm342, %v114, 0
    %v371 = vsel %vm342, %v121, 0
    %v374 = vsel %vm342, %v128, 0
    %v377 = vsel %vm342, %v135, 0
    %v380 = vsel %vm342, %v142, 0
    %v383 = vsel %vm342, %v149, 0
    %v386 = vsel %vm342, %v156, 0
    %v389 = vsel %vm342, %v163, 0
    %v392 = vsel %vm342, %v170, 0
    %v395 = vsel %vm342, %v177, 0
    %v398 = vsel %vm342, %v184, 0
    %v401 = vsel %vm342, %v191, 0
    %v404 = vsel %vm342, %v198, 0
    %v407 = vsel %vm342, %v205, 0
    %v410 = vsel %vm342, %v212, 0
    %v413 = vsel %vm342, %v219, 0
    %v416 = vsel %vm342, %v226, 0
    %v419 = vsel %vm342, %v233, 0
    %v422 = vsel %vm342, %v240, 0
    %v425 = vsel %vm342, %v247, 0
    %v428 = vsel %vm342, %v254, 0
    %v431 = vsel %vm342, %v261, 0
    %v434 = vsel %vm342, %v268, 0
    %v437 = vsel %vm342, %v275, 0
    %v440 = vsel %vm342, %v282, 0
    %v443 = vsel %vm342, %v289, 0
    %v446 = vsel %vm342, %v296, 0
    %v449 = vsel %vm342, %v303, 0
    %v452 = vsel %vm342, %v310, 0
    %v455 = vsel %vm342, %v317, 0
    %v458 = vsel %vm342, %v324, 0
    %460 = vmatprep.subr.mxu0 %v165
    %461 = vmatpush1.xpose.msra.mxu0 %v164
    %462 = vmatprep.subr.mxu0 %v158
    %463 = vmatpush1.xpose.msra.mxu0 %v157
    %464 = vmatprep.subr.mxu0 %v151
    %465 = vmatpush1.xpose.msra.mxu0 %v150
    %466 = vmatprep.subr.mxu0 %v144
    %467 = vmatpush1.xpose.msra.mxu0 %v143
    %468 = vmatprep.subr.mxu0 %v137
    %469 = vmatpush1.xpose.msra.mxu0 %v136
    %470 = vmatprep.subr.mxu0 %v130
    %471 = vmatpush1.xpose.msra.mxu0 %v129
    %472 = vmatprep.subr.mxu0 %v123
    %473 = vmatpush1.xpose.msra.mxu0 %v122
    %474 = vmatprep.subr.mxu0 %v116
    %475 = vmatpush1.xpose.msra.mxu0 %v115
    %476 = vmatprep.subr.mxu0 %v109
    %477 = vmatpush1.xpose.msra.mxu0 %v108
    %478 = vmatprep.subr.mxu0 %v102
    %479 = vmatpush1.xpose.msra.mxu0 %v101
    %480 = vmatprep.subr.mxu0 %v95
    %481 = vmatpush1.xpose.msra.mxu0 %v94
    %482 = vmatprep.subr.mxu0 %v88
    %483 = vmatpush1.xpose.msra.mxu0 %v87
    %484 = vmatprep.subr.mxu0 %v81
    %485 = vmatpush1.xpose.msra.mxu0 %v80
    %486 = vmatprep.subr.mxu0 %v74
    %487 = vmatpush1.xpose.msra.mxu0 %v73
    %488 = vmatprep.subr.mxu0 %v67
    %489 = vmatpush1.xpose.msra.mxu0 %v66
    %490 = vmatprep.subr.mxu0 %v60
    %491 = vmatpush1.xpose.msra.mxu0 %v59
    %492 = vmatprep.subr.mxu0 %v277
    %493 = vmatpush2.xpose.msra.mxu0 %v276
    %494 = vmatprep.subr.mxu0 %v270
    %495 = vmatpush2.xpose.msra.mxu0 %v269
    %496 = vmatprep.subr.mxu0 %v263
    %497 = vmatpush2.xpose.msra.mxu0 %v262
    %498 = vmatprep.subr.mxu0 %v256
    %499 = vmatpush2.xpose.msra.mxu0 %v255
    %500 = vmatprep.subr.mxu0 %v249
    %501 = vmatpush2.xpose.msra.mxu0 %v248
    %502 = vmatprep.subr.mxu0 %v242
    %503 = vmatpush2.xpose.msra.mxu0 %v241
    %504 = vmatprep.subr.mxu0 %v235
    %505 = vmatpush2.xpose.msra.mxu0 %v234
    %506 = vmatprep.subr.mxu0 %v228
    %507 = vmatpush2.xpose.msra.mxu0 %v227
    %508 = vmatprep.subr.mxu0 %v221
    %509 = vmatpush2.xpose.msra.mxu0 %v220
    %510 = vmatprep.subr.mxu0 %v214
    %511 = vmatpush2.xpose.msra.mxu0 %v213
    %512 = vmatprep.subr.mxu0 %v207
    %513 = vmatpush2.xpose.msra.mxu0 %v206
    %514 = vmatprep.subr.mxu0 %v200
    %515 = vmatpush2.xpose.msra.mxu0 %v199
    %516 = vmatprep.subr.mxu0 %v193
    %517 = vmatpush2.xpose.msra.mxu0 %v192
    %518 = vmatprep.subr.mxu0 %v186
    %519 = vmatpush2.xpose.msra.mxu0 %v185
    %520 = vmatprep.subr.mxu0 %v179
    %521 = vmatpush2.xpose.msra.mxu0 %v178
    %522 = vmatprep.subr.mxu0 %v172
    %523 = vmatpush2.xpose.msra.mxu0 %v171
    %524 = vmatprep.mubr.f32.mxu0 %v53
    %525 = vmatmul.mubr.f32.gmra.mxu0 %v52
    %v526 = vpop.f32.mrf.mxu0
    %v527 = vadd.f32 %v330, %v526
    %v528 = vpop.f32.mrf.mxu0
    %v529 = vadd.f32 %v334, %v528
    %530 = vdwg.mxu0
    %531 = vmatprep.subr.mxu0 %v167
    %532 = vmatpush1.xpose.msra.mxu0 %v166
    %533 = vmatprep.subr.mxu0 %v160
    %534 = vmatpush1.xpose.msra.mxu0 %v159
    %535 = vmatprep.subr.mxu0 %v153
    %536 = vmatpush1.xpose.msra.mxu0 %v152
    %537 = vmatprep.subr.mxu0 %v146
    %538 = vmatpush1.xpose.msra.mxu0 %v145
    %539 = vmatprep.subr.mxu0 %v139
    %540 = vmatpush1.xpose.msra.mxu0 %v138
    %541 = vmatprep.subr.mxu0 %v132
    %542 = vmatpush1.xpose.msra.mxu0 %v131
    %543 = vmatprep.subr.mxu0 %v125
    %544 = vmatpush1.xpose.msra.mxu0 %v124
    %545 = vmatprep.subr.mxu0 %v118
    %546 = vmatpush1.xpose.msra.mxu0 %v117
    %547 = vmatprep.subr.mxu0 %v111
    %548 = vmatpush1.xpose.msra.mxu0 %v110
    %549 = vmatprep.subr.mxu0 %v104
    %550 = vmatpush1.xpose.msra.mxu0 %v103
    %551 = vmatprep.subr.mxu0 %v97
    %552 = vmatpush1.xpose.msra.mxu0 %v96
    %553 = vmatprep.subr.mxu0 %v90
    %554 = vmatpush1.xpose.msra.mxu0 %v89
    %555 = vmatprep.subr.mxu0 %v83
    %556 = vmatpush1.xpose.msra.mxu0 %v82
    %557 = vmatprep.subr.mxu0 %v76
    %558 = vmatpush1.xpose.msra.mxu0 %v75
    %559 = vmatprep.subr.mxu0 %v69
    %560 = vmatpush1.xpose.msra.mxu0 %v68
    %561 = vmatprep.subr.mxu0 %v62
    %562 = vmatpush1.xpose.msra.mxu0 %v61
    %563 = vmatprep.subr.mxu0 %v279
    %564 = vmatpush2.xpose.msra.mxu0 %v278
    %565 = vmatprep.subr.mxu0 %v272
    %566 = vmatpush2.xpose.msra.mxu0 %v271
    %567 = vmatprep.subr.mxu0 %v265
    %568 = vmatpush2.xpose.msra.mxu0 %v264
    %569 = vmatprep.subr.mxu0 %v258
    %570 = vmatpush2.xpose.msra.mxu0 %v257
    %571 = vmatprep.subr.mxu0 %v251
    %572 = vmatpush2.xpose.msra.mxu0 %v250
    %573 = vmatprep.subr.mxu0 %v244
    %574 = vmatpush2.xpose.msra.mxu0 %v243
    %575 = vmatprep.subr.mxu0 %v237
    %576 = vmatpush2.xpose.msra.mxu0 %v236
    %577 = vmatprep.subr.mxu0 %v230
    %578 = vmatpush2.xpose.msra.mxu0 %v229
    %579 = vmatprep.subr.mxu0 %v223
    %580 = vmatpush2.xpose.msra.mxu0 %v222
    %581 = vmatprep.subr.mxu0 %v216
    %582 = vmatpush2.xpose.msra.mxu0 %v215
    %583 = vmatprep.subr.mxu0 %v209
    %584 = vmatpush2.xpose.msra.mxu0 %v208
    %585 = vmatprep.subr.mxu0 %v202
    %586 = vmatpush2.xpose.msra.mxu0 %v201
    %587 = vmatprep.subr.mxu0 %v195
    %588 = vmatpush2.xpose.msra.mxu0 %v194
    %589 = vmatprep.subr.mxu0 %v188
    %590 = vmatpush2.xpose.msra.mxu0 %v187
    %591 = vmatprep.subr.mxu0 %v181
    %592 = vmatpush2.xpose.msra.mxu0 %v180
    %593 = vmatprep.subr.mxu0 %v174
    %594 = vmatpush2.xpose.msra.mxu0 %v173
    %595 = vmatprep.mubr.f32.mxu0 %v55
    %596 = vmatmul.mubr.f32.gmra.mxu0 %v54
    %v597 = vpop.f32.mrf.mxu0
    %v598 = vadd.f32 %v527, %v597
    %v599 = vpop.f32.mrf.mxu0
    %v600 = vadd.f32 %v529, %v599
    %601 = vdwg.mxu0
    %602 = vmatprep.subr.mxu0 %v169
    %603 = vmatpush1.xpose.msra.mxu0 %v168
    %604 = vmatprep.subr.mxu0 %v162
    %605 = vmatpush1.xpose.msra.mxu0 %v161
    %606 = vmatprep.subr.mxu0 %v155
    %607 = vmatpush1.xpose.msra.mxu0 %v154
    %608 = vmatprep.subr.mxu0 %v148
    %609 = vmatpush1.xpose.msra.mxu0 %v147
    %610 = vmatprep.subr.mxu0 %v141
    %611 = vmatpush1.xpose.msra.mxu0 %v140
    %612 = vmatprep.subr.mxu0 %v134
    %613 = vmatpush1.xpose.msra.mxu0 %v133
    %614 = vmatprep.subr.mxu0 %v127
    %615 = vmatpush1.xpose.msra.mxu0 %v126
    %616 = vmatprep.subr.mxu0 %v120
    %617 = vmatpush1.xpose.msra.mxu0 %v119
    %618 = vmatprep.subr.mxu0 %v113
    %619 = vmatpush1.xpose.msra.mxu0 %v112
    %620 = vmatprep.subr.mxu0 %v106
    %621 = vmatpush1.xpose.msra.mxu0 %v105
    %622 = vmatprep.subr.mxu0 %v99
    %623 = vmatpush1.xpose.msra.mxu0 %v98
    %624 = vmatprep.subr.mxu0 %v92
    %625 = vmatpush1.xpose.msra.mxu0 %v91
    %626 = vmatprep.subr.mxu0 %v85
    %627 = vmatpush1.xpose.msra.mxu0 %v84
    %628 = vmatprep.subr.mxu0 %v78
    %629 = vmatpush1.xpose.msra.mxu0 %v77
    %630 = vmatprep.subr.mxu0 %v71
    %631 = vmatpush1.xpose.msra.mxu0 %v70
    %632 = vmatprep.subr.mxu0 %v64
    %633 = vmatpush1.xpose.msra.mxu0 %v63
    %634 = vmatprep.subr.mxu0 %v281
    %635 = vmatpush2.xpose.msra.mxu0 %v280
    %636 = vmatprep.subr.mxu0 %v274
    %637 = vmatpush2.xpose.msra.mxu0 %v273
    %638 = vmatprep.subr.mxu0 %v267
    %639 = vmatpush2.xpose.msra.mxu0 %v266
    %640 = vmatprep.subr.mxu0 %v260
    %641 = vmatpush2.xpose.msra.mxu0 %v259
    %642 = vmatprep.subr.mxu0 %v253
    %643 = vmatpush2.xpose.msra.mxu0 %v252
    %644 = vmatprep.subr.mxu0 %v246
    %645 = vmatpush2.xpose.msra.mxu0 %v245
    %646 = vmatprep.subr.mxu0 %v239
    %647 = vmatpush2.xpose.msra.mxu0 %v238
    %648 = vmatprep.subr.mxu0 %v232
    %649 = vmatpush2.xpose.msra.mxu0 %v231
    %650 = vmatprep.subr.mxu0 %v225
    %651 = vmatpush2.xpose.msra.mxu0 %v224
    %652 = vmatprep.subr.mxu0 %v218
    %653 = vmatpush2.xpose.msra.mxu0 %v217
    %654 = vmatprep.subr.mxu0 %v211
    %655 = vmatpush2.xpose.msra.mxu0 %v210
    %656 = vmatprep.subr.mxu0 %v204
    %657 = vmatpush2.xpose.msra.mxu0 %v203
    %658 = vmatprep.subr.mxu0 %v197
    %659 = vmatpush2.xpose.msra.mxu0 %v196
    %660 = vmatprep.subr.mxu0 %v190
    %661 = vmatpush2.xpose.msra.mxu0 %v189
    %662 = vmatprep.subr.mxu0 %v183
    %663 = vmatpush2.xpose.msra.mxu0 %v182
    %664 = vmatprep.subr.mxu0 %v176
    %665 = vmatpush2.xpose.msra.mxu0 %v175
    %666 = vmatprep.mubr.f32.mxu0 %v57
    %667 = vmatmul.mubr.f32.gmra.mxu0 %v56
    %v668 = vpop.f32.mrf.mxu0
    %v669 = vadd.f32 %v598, %v668
    %v670 = vpop.f32.mrf.mxu0
    %v671 = vadd.f32 %v600, %v670
    %672 = vdwg.mxu0
    %673 = vmatprep.subr.mxu0 0.0
    %674 = vmatpush1.xpose.msra.mxu0 %v392
    %675 = vmatprep.subr.mxu0 0.0
    %676 = vmatpush1.xpose.msra.mxu0 %v389
    %677 = vmatprep.subr.mxu0 0.0
    %678 = vmatpush1.xpose.msra.mxu0 %v386
    %679 = vmatprep.subr.mxu0 0.0
    %680 = vmatpush1.xpose.msra.mxu0 %v383
    %681 = vmatprep.subr.mxu0 0.0
    %682 = vmatpush1.xpose.msra.mxu0 %v380
    %683 = vmatprep.subr.mxu0 0.0
    %684 = vmatpush1.xpose.msra.mxu0 %v377
    %685 = vmatprep.subr.mxu0 0.0
    %686 = vmatpush1.xpose.msra.mxu0 %v374
    %687 = vmatprep.subr.mxu0 0.0
    %688 = vmatpush1.xpose.msra.mxu0 %v371
    %689 = vmatprep.subr.mxu0 0.0
    %690 = vmatpush1.xpose.msra.mxu0 %v368
    %691 = vmatprep.subr.mxu0 0.0
    %692 = vmatpush1.xpose.msra.mxu0 %v365
    %693 = vmatprep.subr.mxu0 0.0
    %694 = vmatpush1.xpose.msra.mxu0 %v362
    %695 = vmatprep.subr.mxu0 0.0
    %696 = vmatpush1.xpose.msra.mxu0 %v359
    %697 = vmatprep.subr.mxu0 0.0
    %698 = vmatpush1.xpose.msra.mxu0 %v356
    %699 = vmatprep.subr.mxu0 0.0
    %700 = vmatpush1.xpose.msra.mxu0 %v353
    %701 = vmatprep.subr.mxu0 0.0
    %702 = vmatpush1.xpose.msra.mxu0 %v350
    %703 = vmatprep.subr.mxu0 0.0
    %704 = vmatpush1.xpose.msra.mxu0 %v347
    %705 = vmatprep.subr.mxu0 0.0
    %706 = vmatpush2.xpose.msra.mxu0 %v440
    %707 = vmatprep.subr.mxu0 0.0
    %708 = vmatpush2.xpose.msra.mxu0 %v437
    %709 = vmatprep.subr.mxu0 0.0
    %710 = vmatpush2.xpose.msra.mxu0 %v434
    %711 = vmatprep.subr.mxu0 0.0
    %712 = vmatpush2.xpose.msra.mxu0 %v431
    %713 = vmatprep.subr.mxu0 0.0
    %714 = vmatpush2.xpose.msra.mxu0 %v428
    %715 = vmatprep.subr.mxu0 0.0
    %716 = vmatpush2.xpose.msra.mxu0 %v425
    %717 = vmatprep.subr.mxu0 0.0
    %718 = vmatpush2.xpose.msra.mxu0 %v422
    %719 = vmatprep.subr.mxu0 0.0
    %720 = vmatpush2.xpose.msra.mxu0 %v419
    %721 = vmatprep.subr.mxu0 0.0
    %722 = vmatpush2.xpose.msra.mxu0 %v416
    %723 = vmatprep.subr.mxu0 0.0
    %724 = vmatpush2.xpose.msra.mxu0 %v413
    %725 = vmatprep.subr.mxu0 0.0
    %726 = vmatpush2.xpose.msra.mxu0 %v410
    %727 = vmatprep.subr.mxu0 0.0
    %728 = vmatpush2.xpose.msra.mxu0 %v407
    %729 = vmatprep.subr.mxu0 0.0
    %730 = vmatpush2.xpose.msra.mxu0 %v404
    %731 = vmatprep.subr.mxu0 0.0
    %732 = vmatpush2.xpose.msra.mxu0 %v401
    %733 = vmatprep.subr.mxu0 0.0
    %734 = vmatpush2.xpose.msra.mxu0 %v398
    %735 = vmatprep.subr.mxu0 0.0
    %736 = vmatpush2.xpose.msra.mxu0 %v395
    %737 = vmatprep.mubr.f32.mxu0 0.0
    %738 = vmatmul.mubr.f32.gmra.mxu0 %v344
    %v739 = vpop.f32.mrf.mxu0
    %v740 = vadd.f32 %v669, %v739
    %v741 = vpop.f32.mrf.mxu0
    %v742 = vadd.f32 %v671, %v741
    %743 = vdwg.mxu0
    %744 = vmatprep.subr.mxu0 0.0
    %745 = vmatpush1.xpose.msra.mxu0 0.0
    %746 = vmatprep.subr.mxu0 0.0
    %747 = vmatpush1.xpose.msra.mxu0 0.0
    %748 = vmatprep.subr.mxu0 0.0
    %749 = vmatpush1.xpose.msra.mxu0 0.0
    %750 = vmatprep.subr.mxu0 0.0
    %751 = vmatpush1.xpose.msra.mxu0 0.0
    %752 = vmatprep.subr.mxu0 0.0
    %753 = vmatpush1.xpose.msra.mxu0 0.0
    %754 = vmatprep.subr.mxu0 0.0
    %755 = vmatpush1.xpose.msra.mxu0 0.0
    %756 = vmatprep.subr.mxu0 0.0
    %757 = vmatpush1.xpose.msra.mxu0 0.0
    %758 = vmatprep.subr.mxu0 0.0
    %759 = vmatpush1.xpose.msra.mxu0 0.0
    %760 = vmatprep.subr.mxu0 0.0
    %761 = vmatpush1.xpose.msra.mxu0 0.0
    %762 = vmatprep.subr.mxu0 0.0
    %763 = vmatpush1.xpose.msra.mxu0 0.0
    %764 = vmatprep.subr.mxu0 %v319
    %765 = vmatpush1.xpose.msra.mxu0 %v318
    %766 = vmatprep.subr.mxu0 %v312
    %767 = vmatpush1.xpose.msra.mxu0 %v311
    %768 = vmatprep.subr.mxu0 %v305
    %769 = vmatpush1.xpose.msra.mxu0 %v304
    %770 = vmatprep.subr.mxu0 %v298
    %771 = vmatpush1.xpose.msra.mxu0 %v297
    %772 = vmatprep.subr.mxu0 %v291
    %773 = vmatpush1.xpose.msra.mxu0 %v290
    %774 = vmatprep.subr.mxu0 %v284
    %775 = vmatpush1.xpose.msra.mxu0 %v283
    %776 = vmatprep.subr.mxu0 0.0
    %777 = vmatpush2.xpose.msra.mxu0 0.0
    %778 = vmatprep.subr.mxu0 0.0
    %779 = vmatpush2.xpose.msra.mxu0 0.0
    %780 = vmatprep.subr.mxu0 0.0
    %781 = vmatpush2.xpose.msra.mxu0 0.0
    %782 = vmatprep.subr.mxu0 0.0
    %783 = vmatpush2.xpose.msra.mxu0 0.0
    %784 = vmatprep.subr.mxu0 0.0
    %785 = vmatpush2.xpose.msra.mxu0 0.0
    %786 = vmatprep.subr.mxu0 0.0
    %787 = vmatpush2.xpose.msra.mxu0 0.0
    %788 = vmatprep.subr.mxu0 0.0
    %789 = vmatpush2.xpose.msra.mxu0 0.0
    %790 = vmatprep.subr.mxu0 0.0
    %791 = vmatpush2.xpose.msra.mxu0 0.0
    %792 = vmatprep.subr.mxu0 0.0
    %793 = vmatpush2.xpose.msra.mxu0 0.0
    %794 = vmatprep.subr.mxu0 0.0
    %795 = vmatpush2.xpose.msra.mxu0 0.0
    %796 = vmatprep.subr.mxu0 0.0
    %797 = vmatpush2.xpose.msra.mxu0 0.0
    %798 = vmatprep.subr.mxu0 0.0
    %799 = vmatpush2.xpose.msra.mxu0 0.0
    %800 = vmatprep.subr.mxu0 0.0
    %801 = vmatpush2.xpose.msra.mxu0 0.0
    %802 = vmatprep.subr.mxu0 0.0
    %803 = vmatpush2.xpose.msra.mxu0 0.0
    %804 = vmatprep.subr.mxu0 0.0
    %805 = vmatpush2.xpose.msra.mxu0 0.0
    %806 = vmatprep.subr.mxu0 0.0
    %807 = vmatpush2.xpose.msra.mxu0 0.0
    %808 = vmatprep.mubr.f32.mxu0 %v53
    %809 = vmatmul.mubr.f32.gmra.mxu0 %v52
    %v810 = vpop.f32.mrf.mxu0
    %v811 = vadd.f32 %v338, %v810
    %v812 = vpop.f32.mrf.mxu0
    %813 = vdwg.mxu0
    %814 = vmatprep.subr.mxu0 0.0
    %815 = vmatpush1.xpose.msra.mxu0 0.0
    %816 = vmatprep.subr.mxu0 0.0
    %817 = vmatpush1.xpose.msra.mxu0 0.0
    %818 = vmatprep.subr.mxu0 0.0
    %819 = vmatpush1.xpose.msra.mxu0 0.0
    %820 = vmatprep.subr.mxu0 0.0
    %821 = vmatpush1.xpose.msra.mxu0 0.0
    %822 = vmatprep.subr.mxu0 0.0
    %823 = vmatpush1.xpose.msra.mxu0 0.0
    %824 = vmatprep.subr.mxu0 0.0
    %825 = vmatpush1.xpose.msra.mxu0 0.0
    %826 = vmatprep.subr.mxu0 0.0
    %827 = vmatpush1.xpose.msra.mxu0 0.0
    %828 = vmatprep.subr.mxu0 0.0
    %829 = vmatpush1.xpose.msra.mxu0 0.0
    %830 = vmatprep.subr.mxu0 0.0
    %831 = vmatpush1.xpose.msra.mxu0 0.0
    %832 = vmatprep.subr.mxu0 0.0
    %833 = vmatpush1.xpose.msra.mxu0 0.0
    %834 = vmatprep.subr.mxu0 %v321
    %835 = vmatpush1.xpose.msra.mxu0 %v320
    %836 = vmatprep.subr.mxu0 %v314
    %837 = vmatpush1.xpose.msra.mxu0 %v313
    %838 = vmatprep.subr.mxu0 %v307
    %839 = vmatpush1.xpose.msra.mxu0 %v306
    %840 = vmatprep.subr.mxu0 %v300
    %841 = vmatpush1.xpose.msra.mxu0 %v299
    %842 = vmatprep.subr.mxu0 %v293
    %843 = vmatpush1.xpose.msra.mxu0 %v292
    %844 = vmatprep.subr.mxu0 %v286
    %845 = vmatpush1.xpose.msra.mxu0 %v285
    %846 = vmatprep.subr.mxu0 0.0
    %847 = vmatpush2.xpose.msra.mxu0 0.0
    %848 = vmatprep.subr.mxu0 0.0
    %849 = vmatpush2.xpose.msra.mxu0 0.0
    %850 = vmatprep.subr.mxu0 0.0
    %851 = vmatpush2.xpose.msra.mxu0 0.0
    %852 = vmatprep.subr.mxu0 0.0
    %853 = vmatpush2.xpose.msra.mxu0 0.0
    %854 = vmatprep.subr.mxu0 0.0
    %855 = vmatpush2.xpose.msra.mxu0 0.0
    %856 = vmatprep.subr.mxu0 0.0
    %857 = vmatpush2.xpose.msra.mxu0 0.0
    %858 = vmatprep.subr.mxu0 0.0
    %859 = vmatpush2.xpose.msra.mxu0 0.0
    %860 = vmatprep.subr.mxu0 0.0
    %861 = vmatpush2.xpose.msra.mxu0 0.0
    %862 = vmatprep.subr.mxu0 0.0
    %863 = vmatpush2.xpose.msra.mxu0 0.0
    %864 = vmatprep.subr.mxu0 0.0
    %865 = vmatpush2.xpose.msra.mxu0 0.0
    %866 = vmatprep.subr.mxu0 0.0
    %867 = vmatpush2.xpose.msra.mxu0 0.0
    %868 = vmatprep.subr.mxu0 0.0
    %869 = vmatpush2.xpose.msra.mxu0 0.0
    %870 = vmatprep.subr.mxu0 0.0
    %871 = vmatpush2.xpose.msra.mxu0 0.0
    %872 = vmatprep.subr.mxu0 0.0
    %873 = vmatpush2.xpose.msra.mxu0 0.0
    %874 = vmatprep.subr.mxu0 0.0
    %875 = vmatpush2.xpose.msra.mxu0 0.0
    %876 = vmatprep.subr.mxu0 0.0
    %877 = vmatpush2.xpose.msra.mxu0 0.0
    %878 = vmatprep.mubr.f32.mxu0 %v55
    %879 = vmatmul.mubr.f32.gmra.mxu0 %v54
    %v880 = vpop.f32.mrf.mxu0
    %v881 = vadd.f32 %v811, %v880
    %v882 = vpop.f32.mrf.mxu0
    %883 = vdwg.mxu0
    %884 = vmatprep.subr.mxu0 0.0
    %885 = vmatpush1.xpose.msra.mxu0 0.0
    %886 = vmatprep.subr.mxu0 0.0
    %887 = vmatpush1.xpose.msra.mxu0 0.0
    %888 = vmatprep.subr.mxu0 0.0
    %889 = vmatpush1.xpose.msra.mxu0 0.0
    %890 = vmatprep.subr.mxu0 0.0
    %891 = vmatpush1.xpose.msra.mxu0 0.0
    %892 = vmatprep.subr.mxu0 0.0
    %893 = vmatpush1.xpose.msra.mxu0 0.0
    %894 = vmatprep.subr.mxu0 0.0
    %895 = vmatpush1.xpose.msra.mxu0 0.0
    %896 = vmatprep.subr.mxu0 0.0
    %897 = vmatpush1.xpose.msra.mxu0 0.0
    %898 = vmatprep.subr.mxu0 0.0
    %899 = vmatpush1.xpose.msra.mxu0 0.0
    %900 = vmatprep.subr.mxu0 0.0
    %901 = vmatpush1.xpose.msra.mxu0 0.0
    %902 = vmatprep.subr.mxu0 0.0
    %903 = vmatpush1.xpose.msra.mxu0 0.0
    %904 = vmatprep.subr.mxu0 %v323
    %905 = vmatpush1.xpose.msra.mxu0 %v322
    %906 = vmatprep.subr.mxu0 %v316
    %907 = vmatpush1.xpose.msra.mxu0 %v315
    %908 = vmatprep.subr.mxu0 %v309
    %909 = vmatpush1.xpose.msra.mxu0 %v308
    %910 = vmatprep.subr.mxu0 %v302
    %911 = vmatpush1.xpose.msra.mxu0 %v301
    %912 = vmatprep.subr.mxu0 %v295
    %913 = vmatpush1.xpose.msra.mxu0 %v294
    %914 = vmatprep.subr.mxu0 %v288
    %915 = vmatpush1.xpose.msra.mxu0 %v287
    %916 = vmatprep.subr.mxu0 0.0
    %917 = vmatpush2.xpose.msra.mxu0 0.0
    %918 = vmatprep.subr.mxu0 0.0
    %919 = vmatpush2.xpose.msra.mxu0 0.0
    %920 = vmatprep.subr.mxu0 0.0
    %921 = vmatpush2.xpose.msra.mxu0 0.0
    %922 = vmatprep.subr.mxu0 0.0
    %923 = vmatpush2.xpose.msra.mxu0 0.0
    %924 = vmatprep.subr.mxu0 0.0
    %925 = vmatpush2.xpose.msra.mxu0 0.0
    %926 = vmatprep.subr.mxu0 0.0
    %927 = vmatpush2.xpose.msra.mxu0 0.0
    %928 = vmatprep.subr.mxu0 0.0
    %929 = vmatpush2.xpose.msra.mxu0 0.0
    %930 = vmatprep.subr.mxu0 0.0
    %931 = vmatpush2.xpose.msra.mxu0 0.0
    %932 = vmatprep.subr.mxu0 0.0
    %933 = vmatpush2.xpose.msra.mxu0 0.0
    %934 = vmatprep.subr.mxu0 0.0
    %935 = vmatpush2.xpose.msra.mxu0 0.0
    %936 = vmatprep.subr.mxu0 0.0
    %937 = vmatpush2.xpose.msra.mxu0 0.0
    %938 = vmatprep.subr.mxu0 0.0
    %939 = vmatpush2.xpose.msra.mxu0 0.0
    %940 = vmatprep.subr.mxu0 0.0
    %941 = vmatpush2.xpose.msra.mxu0 0.0
    %942 = vmatprep.subr.mxu0 0.0
    %943 = vmatpush2.xpose.msra.mxu0 0.0
    %944 = vmatprep.subr.mxu0 0.0
    %945 = vmatpush2.xpose.msra.mxu0 0.0
    %946 = vmatprep.subr.mxu0 0.0
    %947 = vmatpush2.xpose.msra.mxu0 0.0
    %948 = vmatprep.mubr.f32.mxu0 %v57
    %949 = vmatmul.mubr.f32.gmra.mxu0 %v56
    %v950 = vpop.f32.mrf.mxu0
    %v951 = vadd.f32 %v881, %v950
    %v952 = vpop.f32.mrf.mxu0
    %953 = vdwg.mxu0
    %954 = vmatprep.subr.mxu0 0.0
    %955 = vmatpush1.xpose.msra.mxu0 0.0
    %956 = vmatprep.subr.mxu0 0.0
    %957 = vmatpush1.xpose.msra.mxu0 0.0
    %958 = vmatprep.subr.mxu0 0.0
    %959 = vmatpush1.xpose.msra.mxu0 0.0
    %960 = vmatprep.subr.mxu0 0.0
    %961 = vmatpush1.xpose.msra.mxu0 0.0
    %962 = vmatprep.subr.mxu0 0.0
    %963 = vmatpush1.xpose.msra.mxu0 0.0
    %964 = vmatprep.subr.mxu0 0.0
    %965 = vmatpush1.xpose.msra.mxu0 0.0
    %966 = vmatprep.subr.mxu0 0.0
    %967 = vmatpush1.xpose.msra.mxu0 0.0
    %968 = vmatprep.subr.mxu0 0.0
    %969 = vmatpush1.xpose.msra.mxu0 0.0
    %970 = vmatprep.subr.mxu0 0.0
    %971 = vmatpush1.xpose.msra.mxu0 0.0
    %972 = vmatprep.subr.mxu0 0.0
    %973 = vmatpush1.xpose.msra.mxu0 0.0
    %974 = vmatprep.subr.mxu0 0.0
    %975 = vmatpush1.xpose.msra.mxu0 %v458
    %976 = vmatprep.subr.mxu0 0.0
    %977 = vmatpush1.xpose.msra.mxu0 %v455
    %978 = vmatprep.subr.mxu0 0.0
    %979 = vmatpush1.xpose.msra.mxu0 %v452
    %980 = vmatprep.subr.mxu0 0.0
    %981 = vmatpush1.xpose.msra.mxu0 %v449
    %982 = vmatprep.subr.mxu0 0.0
    %983 = vmatpush1.xpose.msra.mxu0 %v446
    %984 = vmatprep.subr.mxu0 0.0
    %985 = vmatpush1.xpose.msra.mxu0 %v443
    %986 = vmatprep.subr.mxu0 0.0
    %987 = vmatpush2.xpose.msra.mxu0 0.0
    %988 = vmatprep.subr.mxu0 0.0
    %989 = vmatpush2.xpose.msra.mxu0 0.0
    %990 = vmatprep.subr.mxu0 0.0
    %991 = vmatpush2.xpose.msra.mxu0 0.0
    %992 = vmatprep.subr.mxu0 0.0
    %993 = vmatpush2.xpose.msra.mxu0 0.0
    %994 = vmatprep.subr.mxu0 0.0
    %995 = vmatpush2.xpose.msra.mxu0 0.0
    %996 = vmatprep.subr.mxu0 0.0
    %997 = vmatpush2.xpose.msra.mxu0 0.0
    %998 = vmatprep.subr.mxu0 0.0
    %999 = vmatpush2.xpose.msra.mxu0 0.0
    %1000 = vmatprep.subr.mxu0 0.0
    %1001 = vmatpush2.xpose.msra.mxu0 0.0
    %1002 = vmatprep.subr.mxu0 0.0
    %1003 = vmatpush2.xpose.msra.mxu0 0.0
    %1004 = vmatprep.subr.mxu0 0.0
    %1005 = vmatpush2.xpose.msra.mxu0 0.0
    %1006 = vmatprep.subr.mxu0 0.0
    %1007 = vmatpush2.xpose.msra.mxu0 0.0
    %1008 = vmatprep.subr.mxu0 0.0
    %1009 = vmatpush2.xpose.msra.mxu0 0.0
    %1010 = vmatprep.subr.mxu0 0.0
    %1011 = vmatpush2.xpose.msra.mxu0 0.0
    %1012 = vmatprep.subr.mxu0 0.0
    %1013 = vmatpush2.xpose.msra.mxu0 0.0
    %1014 = vmatprep.subr.mxu0 0.0
    %1015 = vmatpush2.xpose.msra.mxu0 0.0
    %1016 = vmatprep.subr.mxu0 0.0
    %1017 = vmatpush2.xpose.msra.mxu0 0.0
    %1018 = vmatprep.mubr.f32.mxu0 0.0
    %1019 = vmatmul.mubr.f32.gmra.mxu0 %v344
    %v1020 = vpop.f32.mrf.mxu0
    %v1021 = vadd.f32 %v951, %v1020
    %v1022 = vpop.f32.mrf.mxu0
    %1023 = vdwg.mxu0
    %v1024 = vmax.f32 %v740, 0.0
    %v1025 = vmax.f32 %v742, 0.0
    %v1026 = vmax.f32 %v1021, 0.0
    %1027 = vst [vmem:[#allocation8] sm:$0xff] %v1024
    %1028 = vst [vmem:[#allocation8 + $0x8] sm:$0xff] %v1025
    %vm1029 = vcmask 359424
    %1030 = vst.msk [vmem:[#allocation8 + $0x10] sm:$0xff] %vm1029, %v1026
    // Predicated region
    $region26: #{tpu_custom_call.1} parent=1 // pred_check
      _
    $region27: #{tpu_custom_call.1} parent=1 // pred_check_branch
      %1032 = sbr.rel (0) target = $region29
    $region28: #{tpu_custom_call.1} parent=1 // pred_region
      %s1034 = ssub.s32 384, 384
      %1035 = vsyncadd [#allocation4], %s1034
      %s1037 = sshll.u32 [#allocation8], 4
      %s1038 = int_to_ptr.vmem [resolvable:$true] %s1037
      %1040 = dma.vmem_to_hbm [thread:$0]  %s1038, 384, %s3, [#allocation4]
    $region29: #{tpu_custom_call.1} parent=1 // pred_fallthru
      _
    // Predicated region
    $region30: #{tpu_custom_call.1} parent=1 // pred_check
      _
    $region31: #{tpu_custom_call.1} parent=1 // pred_check_branch
      %1042 = sbr.rel (0) target = $region33
    $region32: #{tpu_custom_call.1} parent=1 // pred_region
      %1043 = dma.done [#allocation4], 384
    $region33: #{tpu_custom_call.1} parent=1 // pred_fallthru
      _
    %1044 = vsyncpa [#allocation3], 1
    %1045 = vsyncpa [#allocation6], 1
    %1046 = vsyncpa [#allocation4], 1

</llo_original>
